<compile_context>
chip_gen: v7x
topology: tpu7x:2x2x1
jax: 0.10.0
libtpu: 0.0.40
codegen_flags: <defaults>
</compile_context>

<pallas_src>
import functools

import jax
import jax.numpy as jnp
from jax.experimental import pallas as pl
from jax.experimental.pallas import tpu as pltpu


def _round_up(x: int, m: int) -> int:
    return ((x + m - 1) // m) * m


def _cdiv(a: int, b: int) -> int:
    return (a + b - 1) // b


def _classification_head_kernel(x_ref, w1_ref, b1_ref, w2_ref, b2_ref, out_ref):
    # x_ref:  [TB, H]   pooled dtype (cast to bf16 here, in-kernel)
    # w1_ref: [H, H]    bf16, pre-transposed to [in, out]
    # b1_ref: [1, H]    f32
    # w2_ref: [H, Lp]   bf16, pre-transposed to [in, out], lane-padded to Lp
    # b2_ref: [1, Lp]   f32
    # out_ref:[TB, Lp]
    x = x_ref[...].astype(w1_ref.dtype)                       # bf16 MXU inputs

    # dense + bias + tanh (dropout is identity in eval mode)
    h = jnp.dot(x, w1_ref[...], preferred_element_type=jnp.float32)
    h = jnp.tanh(h + b1_ref[...])                             # f32 VPU/EUP

    # out_proj (bf16 MXU inputs, f32 accumulation)
    logits = jnp.dot(h.astype(w2_ref.dtype), w2_ref[...],
                     preferred_element_type=jnp.float32)
    out_ref[...] = (logits + b2_ref[...]).astype(out_ref.dtype)


def prepare_params(w_dense, b_dense, w_out, b_out):
    """One-time weight preparation (call once at model init and cache).

    w_dense: [H, H]  PyTorch nn.Linear weight ([out, in])
    b_dense: [H]
    w_out:   [L, H]  PyTorch nn.Linear weight ([out, in])
    b_out:   [L]
    Returns (w1t, b1, w2t, b2, num_labels) ready for classification_head_prepared.
    """
    H = w_dense.shape[1]
    L = w_out.shape[0]
    L_pad = _round_up(L, 128)                                 # lane-dense logits

    w1t = jnp.asarray(w_dense, jnp.bfloat16).T                # [H, H]  [in, out]
    w2t = jnp.asarray(w_out, jnp.bfloat16).T                  # [H, L]  [in, out]
    if L_pad != L:
        w2t = jnp.pad(w2t, ((0, 0), (0, L_pad - L)))          # [H, Lp]

    b1 = jnp.asarray(b_dense, jnp.float32).reshape(1, H)      # [1, H]
    b2 = jnp.asarray(b_out, jnp.float32).reshape(1, L)
    if L_pad != L:
        b2 = jnp.pad(b2, ((0, 0), (0, L_pad - L)))            # [1, Lp]
    return w1t, b1, w2t, b2, L


def _choose_batch_tile(B: int, batch_tile: int, sublane: int):
    # At least 2 grid steps when there is enough work (both v7x TensorCores get
    # half the batch, and x/out DMA overlaps compute); adaptive TB keeps batch
    # padding below one sublane group instead of padding up to a fixed tile.
    n_steps = max(_cdiv(B, batch_tile), 2 if B >= 2 * sublane else 1)
    TB = _round_up(_cdiv(B, n_steps), sublane)
    B_pad = _round_up(B, TB)
    return TB, B_pad


@functools.partial(jax.jit, static_argnames=("num_labels", "batch_tile"))
def classification_head_prepared(pooled, w1t, b1, w2t, b2, *, num_labels,
                                 batch_tile=512):
    """Per-call fused head. Weights must come from prepare_params()."""
    B, H = pooled.shape
    L_pad = w2t.shape[1]
    out_dtype = pooled.dtype
    itemsize = jnp.dtype(out_dtype).itemsize
    sublane = {4: 8, 2: 16, 1: 32}.get(itemsize, 8)           # (8,128) f32 / (16,128) bf16

    TB, B_pad = _choose_batch_tile(B, batch_tile, sublane)
    x = pooled if B_pad == B else jnp.pad(pooled, ((0, B_pad - B), (0, 0)))

    # VMEM budget: single-buffered residents + double-buffered x/out tiles.
    vmem_bytes = (w1t.size * 2 + w2t.size * 2 + (b1.size + b2.size) * 4
                  + 2 * TB * H * itemsize + 2 * TB * L_pad * itemsize)
    vmem_limit = min(max(int(1.25 * vmem_bytes) + (4 << 20), 16 << 20), 64 << 20)

    resident = dict(pipeline_mode=pl.Buffered(1))             # constant index_map
    out = pl.pallas_call(
        _classification_head_kernel,
        out_shape=jax.ShapeDtypeStruct((B_pad, L_pad), out_dtype),
        grid=(B_pad // TB,),
        in_specs=[
            pl.BlockSpec((TB, H), lambda i: (i, 0)),              # x: tiled over batch
            pl.BlockSpec((H, H), lambda i: (0, 0), **resident),   # W1^T: resident
            pl.BlockSpec((1, H), lambda i: (0, 0), **resident),   # b1:   resident
            pl.BlockSpec((H, L_pad), lambda i: (0, 0), **resident),  # W2^T: resident
            pl.BlockSpec((1, L_pad), lambda i: (0, 0), **resident),  # b2:   resident
        ],
        out_specs=pl.BlockSpec((TB, L_pad), lambda i: (i, 0)),
        compiler_params=pltpu.CompilerParams(
            dimension_semantics=("parallel",),   # split batch across v7x TCs
            vmem_limit_bytes=vmem_limit,
        ),
    )(x, w1t, b1, w2t, b2)

    if B_pad == B and L_pad == num_labels:
        return out                                            # no extra slice pass
    return out[:B, :num_labels]


def classification_head(pooled, w_dense, b_dense, w_out, b_out, *, batch_tile=512):
    """Convenience one-shot path (prep + run). For repeated calls, hoist
    prepare_params() out of the loop and call classification_head_prepared."""
    w1t, b1, w2t, b2, num_labels = prepare_params(w_dense, b_dense, w_out, b_out)
    return classification_head_prepared(pooled, w1t, b1, w2t, b2,
                                        num_labels=num_labels,
                                        batch_tile=batch_tile)


def _reference(pooled, w_dense, b_dense, w_out, b_out):
    h = jnp.tanh(pooled @ w_dense.T + b_dense)
    return h @ w_out.T + b_out


if __name__ == "__main__":
    # Small shapes consistent with the module: batch=2, hidden=32, num_labels=4.
    B, H, L = 2, 32, 4

    key = jax.random.PRNGKey(0)
    k_x, k_w1, k_b1, k_w2, k_b2 = jax.random.split(key, 5)

    pooled  = jax.random.normal(k_x,  (B, H), dtype=jnp.float32)
    w_dense = jax.random.normal(k_w1, (H, H), dtype=jnp.float32) * 0.1
    b_dense = jax.random.normal(k_b1, (H,),   dtype=jnp.float32) * 0.1
    w_out   = jax.random.normal(k_w2, (L, H), dtype=jnp.float32) * 0.1
    b_out   = jax.random.normal(k_b2, (L,),   dtype=jnp.float32) * 0.1

    # TODO(synk): Dropout is omitted (eval-mode identity); training-mode dropout
    # would require pltpu.prng_seed/prng_random_bits masking inside the kernel.

    # One-time weight preparation, hoisted out of the per-call path.
    w1t, b1, w2t, b2, num_labels = prepare_params(w_dense, b_dense, w_out, b_out)

    logits = classification_head_prepared(pooled, w1t, b1, w2t, b2,
                                          num_labels=num_labels)
    jax.block_until_ready(logits)

    ref = _reference(pooled, w_dense, b_dense, w_out, b_out)
    assert logits.shape == (B, L), f"bad shape {logits.shape}"
    # bf16 MXU inputs with f32 accumulation -> looser tolerance than pure f32.
    assert jnp.allclose(logits, ref, atol=3e-2, rtol=3e-2), (
        f"mismatch: max abs err {jnp.max(jnp.abs(logits - ref))}")

    print("KERNEL_OK")
</pallas_src>

<mosaic_0001>
module attributes {stable_mosaic.version = 11 : i64} {
  func.func @_classification_head_kernel(%arg0: i32, %arg1: memref<8x32xf32, #tpu.memory_space<vmem>>, %arg2: memref<32x32xbf16, #tpu.memory_space<vmem>>, %arg3: memref<1x32xf32, #tpu.memory_space<vmem>>, %arg4: memref<32x128xbf16, #tpu.memory_space<vmem>>, %arg5: memref<1x128xf32, #tpu.memory_space<vmem>>, %arg6: memref<8x128xf32, #tpu.memory_space<vmem>>) attributes {dimension_semantics = [#tpu.dimension_semantics<parallel>], iteration_bounds = array<i64: 1>, scalar_prefetch = 0 : i64, scratch_operands = 0 : i64, tpu.core_type = #tpu.core_type<tc>, window_params = [{transform_indices = @transform_0, window_bounds = array<i64: 8, 32>}, {pipeline_mode = #tpu.pipeline_mode<synchronous>, transform_indices = @transform_1, window_bounds = array<i64: 32, 32>}, {pipeline_mode = #tpu.pipeline_mode<synchronous>, transform_indices = @transform_2, window_bounds = array<i64: 1, 32>}, {pipeline_mode = #tpu.pipeline_mode<synchronous>, transform_indices = @transform_3, window_bounds = array<i64: 32, 128>}, {pipeline_mode = #tpu.pipeline_mode<synchronous>, transform_indices = @transform_4, window_bounds = array<i64: 1, 128>}, {transform_indices = @transform_5, window_bounds = array<i64: 8, 128>}]} {
    %c0 = arith.constant 0 : index
    %c0_0 = arith.constant 0 : index
    %0 = vector.load %arg1[%c0, %c0_0] : memref<8x32xf32, #tpu.memory_space<vmem>>, vector<8x32xf32>
    %1 = arith.truncf %0 : vector<8x32xf32> to vector<8x32xbf16>
    %c0_1 = arith.constant 0 : index
    %c0_2 = arith.constant 0 : index
    %2 = vector.load %arg2[%c0_1, %c0_2] : memref<32x32xbf16, #tpu.memory_space<vmem>>, vector<32x32xbf16>
    %cst = arith.constant dense<0.000000e+00> : vector<8x32xf32>
    %3 = tpu.matmul %1, %2, %cst {dimension_numbers = #tpu.dot_dimension_numbers<[1], [0], [0], [1], [0, 0, 1, 1], [], []>} : vector<8x32xbf16>, vector<32x32xbf16>, vector<8x32xf32> -> vector<8x32xf32>
    %c0_3 = arith.constant 0 : index
    %c0_4 = arith.constant 0 : index
    %4 = vector.load %arg3[%c0_3, %c0_4] : memref<1x32xf32, #tpu.memory_space<vmem>>, vector<1x32xf32>
    %5 = vector.broadcast %4 : vector<1x32xf32> to vector<8x32xf32>
    %6 = arith.addf %3, %5 : vector<8x32xf32>
    %7 = math.tanh %6 : vector<8x32xf32>
    %8 = arith.truncf %7 : vector<8x32xf32> to vector<8x32xbf16>
    %c0_5 = arith.constant 0 : index
    %c0_6 = arith.constant 0 : index
    %9 = vector.load %arg4[%c0_5, %c0_6] : memref<32x128xbf16, #tpu.memory_space<vmem>>, vector<32x128xbf16>
    %cst_7 = arith.constant dense<0.000000e+00> : vector<8x128xf32>
    %10 = tpu.matmul %8, %9, %cst_7 {dimension_numbers = #tpu.dot_dimension_numbers<[1], [0], [0], [1], [0, 0, 1, 1], [], []>} : vector<8x32xbf16>, vector<32x128xbf16>, vector<8x128xf32> -> vector<8x128xf32>
    %c0_8 = arith.constant 0 : index
    %c0_9 = arith.constant 0 : index
    %11 = vector.load %arg5[%c0_8, %c0_9] : memref<1x128xf32, #tpu.memory_space<vmem>>, vector<1x128xf32>
    %12 = vector.broadcast %11 : vector<1x128xf32> to vector<8x128xf32>
    %13 = arith.addf %10, %12 : vector<8x128xf32>
    %c0_10 = arith.constant 0 : index
    %c0_11 = arith.constant 0 : index
    %14 = vector.load %arg6[%c0_10, %c0_11] : memref<8x128xf32, #tpu.memory_space<vmem>>, vector<8x128xf32>
    tpu.vector_store %arg6[%c0_10, %c0_11], %13 {strides = array<i32>} : memref<8x128xf32, #tpu.memory_space<vmem>>, vector<8x128xf32>,
    return
  }
  func.func @transform_0(%arg0: i32) -> (i32, i32) {
    %c0_i32 = arith.constant 0 : i32
    %c0_i32_0 = arith.constant 0 : i32
    return %arg0, %c0_i32 : i32, i32
  }
  func.func @transform_1(%arg0: i32) -> (i32, i32) {
    %c0_i32 = arith.constant 0 : i32
    %c0_i32_0 = arith.constant 0 : i32
    %c0_i32_1 = arith.constant 0 : i32
    return %c0_i32, %c0_i32_0 : i32, i32
  }
  func.func @transform_2(%arg0: i32) -> (i32, i32) {
    %c0_i32 = arith.constant 0 : i32
    %c0_i32_0 = arith.constant 0 : i32
    %c0_i32_1 = arith.constant 0 : i32
    return %c0_i32, %c0_i32_0 : i32, i32
  }
  func.func @transform_3(%arg0: i32) -> (i32, i32) {
    %c0_i32 = arith.constant 0 : i32
    %c0_i32_0 = arith.constant 0 : i32
    %c0_i32_1 = arith.constant 0 : i32
    return %c0_i32, %c0_i32_0 : i32, i32
  }
  func.func @transform_4(%arg0: i32) -> (i32, i32) {
    %c0_i32 = arith.constant 0 : i32
    %c0_i32_0 = arith.constant 0 : i32
    %c0_i32_1 = arith.constant 0 : i32
    return %c0_i32, %c0_i32_0 : i32, i32
  }
  func.func @transform_5(%arg0: i32) -> (i32, i32) {
    %c0_i32 = arith.constant 0 : i32
    %c0_i32_0 = arith.constant 0 : i32
    return %arg0, %c0_i32 : i32, i32
  }
}

</mosaic_0001>

<llo_original>
// kernel: classification_head_prepared.1
$region0: #{classification_head_prepared.1}
  #allocation0 [shape = 'u32[]', space=smem, size = 0x4, offset = 0x4, fixed_abs, tag = 'smem constant byte address 0x4 - core index']
  #allocation1 [shape = 'u32[144,128]{1,0:T(1,128)}', space=vmem, size = 0x12000, scoped, tag = 'internal scratch']
  %s0 = inlined_call_operand.vmem [shape: f32[8,32], index: 0, kind: input, shape index: {}]
  %s1 = inlined_call_operand.hbm [shape: bf16[32,32], index: 1, kind: input, shape index: {}]
  %s2 = inlined_call_operand.vmem [shape: f32[1,32], index: 2, kind: input, shape index: {}]
  %s3 = inlined_call_operand.vmem [shape: bf16[32,128], index: 3, kind: input, shape index: {}]
  %s4 = inlined_call_operand.vmem [shape: f32[1,128], index: 4, kind: input, shape index: {}]
  %s5 = inlined_call_operand.vmem [shape: f32[8,128], index: 5, kind: output, shape index: {}]
  %s6 = sld [smem:[#allocation0]]
  $region34: #{classification_head_prepared.1} parent=0
    _
  %s8 = ssub.s32 1, %s6
  %s9 = scalar_select 0, %s8, %s6
  $region1: #{classification_head_prepared.1} parent=0
    #allocation2 [shape = 'u8[8192]{0}', space=vmem, size = 0x2000, scoped, tag = 'input window, operand 1, single buffered']
    #allocation3 [shape = 's32[1]{0}', space=sflag, size = 0x4, scoped, tag = 'scoped memory for classification_head_prepared.1']
    %10 = vsyncpa [#allocation3], 0
    // Predicated region
    $region2: #{classification_head_prepared.1} parent=1 // pred_check
      _
    $region3: #{classification_head_prepared.1} parent=1 // pred_check_branch
      %12 = sbr.rel (0) target = $region5
    $region4: #{classification_head_prepared.1} parent=1 // pred_region
      _
    $region5: #{classification_head_prepared.1} parent=1 // pred_fallthru
      _
    // Predicated region
    $region6: #{classification_head_prepared.1} parent=1 // pred_check
      _
    $region7: #{classification_head_prepared.1} parent=1 // pred_check_branch
      %14 = sbr.rel (0) target = $region9
    $region8: #{classification_head_prepared.1} parent=1 // pred_region
      %s16 = ssub.s32 256, 256
      %17 = vsyncadd [#allocation3], %s16
      %s18 = sshll.u32 [#allocation2], 4
      %s19 = int_to_ptr.vmem [resolvable:$true] %s18
      %24 = dma.hbm_to_vmem [thread:$0]  %s1, 256, %s19, [#allocation3], 64, 64, 4
    $region9: #{classification_head_prepared.1} parent=1 // pred_fallthru
      _
    // Predicated region
    $region10: #{classification_head_prepared.1} parent=1 // pred_check
      _
    $region11: #{classification_head_prepared.1} parent=1 // pred_check_branch
      %26 = sbr.rel (0) target = $region13
    $region12: #{classification_head_prepared.1} parent=1 // pred_region
      _
    $region13: #{classification_head_prepared.1} parent=1 // pred_fallthru
      _
    // Predicated region
    $region14: #{classification_head_prepared.1} parent=1 // pred_check
      _
    $region15: #{classification_head_prepared.1} parent=1 // pred_check_branch
      %28 = sbr.rel (0) target = $region17
    $region16: #{classification_head_prepared.1} parent=1 // pred_region
      _
    $region17: #{classification_head_prepared.1} parent=1 // pred_fallthru
      _
    // Predicated region
    $region18: #{classification_head_prepared.1} parent=1 // pred_check
      _
    $region19: #{classification_head_prepared.1} parent=1 // pred_check_branch
      %30 = sbr.rel (0) target = $region21
    $region20: #{classification_head_prepared.1} parent=1 // pred_region
      _
    $region21: #{classification_head_prepared.1} parent=1 // pred_fallthru
      _
    // Predicated region
    $region22: #{classification_head_prepared.1} parent=1 // pred_check
      _
    $region23: #{classification_head_prepared.1} parent=1 // pred_check_branch
      %32 = sbr.rel (0) target = $region25
    $region24: #{classification_head_prepared.1} parent=1 // pred_region
      %33 = dma.done [#allocation3], 256
    $region25: #{classification_head_prepared.1} parent=1 // pred_fallthru
      _
    %v35 = vld [vmem:[%s0] sm:$0xff]
    %v36 = vpack.c.bf16 %v35, %v35
    %v37 = vld [vmem:[#allocation2] sm:$0xf]
    %v38 = vld [vmem:[#allocation2 + $0x4] sm:$0xf]
    %v39 = vld [vmem:[#allocation2 + $0x8] sm:$0xf]
    %v40 = vld [vmem:[#allocation2 + $0xc] sm:$0xf]
    %v41 = vld [vmem:[%s2] sm:$0x1]
    %v43 = vlaneseq
    %v44 = vshrl.u32 %v43, 7
    %v45 = vsub.s32 0, %v44
    %v46 = vrot.slane %v41, %v45
    %v52 = vunpack.c.l.b16 %v37
    %v53 = vunpack.c.l.b16 %v38
    %v54 = vunpack.c.l.b16 %v39
    %v55 = vunpack.c.l.b16 %v40
    %v56 = vpack.c.b16 %v53, %v52
    %v57 = vpack.c.b16 %v55, %v54
    %vm60 = vcmask 261120
    %v62 = vsel %vm60, %v36, 0
    %64 = vmatprep.subr.bf16.mxu0 0
    %65 = vmatpush1.bf16.msra.mxu0 %v56
    %66 = vmatprep.subr.bf16.mxu0 0
    %67 = vmatpush1.bf16.msra.mxu0 %v57
    %68 = vmatprep.subr.bf16.mxu0 0
    %69 = vmatpush1.bf16.msra.mxu0 0
    %70 = vmatprep.subr.bf16.mxu0 0
    %71 = vmatpush1.bf16.msra.mxu0 0
    %72 = vmatprep.subr.bf16.mxu0 0
    %73 = vmatpush1.bf16.msra.mxu0 0
    %74 = vmatprep.subr.bf16.mxu0 0
    %75 = vmatpush1.bf16.msra.mxu0 0
    %76 = vmatprep.subr.bf16.mxu0 0
    %77 = vmatpush1.bf16.msra.mxu0 0
    %78 = vmatprep.subr.bf16.mxu0 0
    %79 = vmatpush1.bf16.msra.mxu0 0
    %80 = vmatprep.subr.bf16.mxu0 0
    %81 = vmatpush1.bf16.msra.mxu0 0
    %82 = vmatprep.subr.bf16.mxu0 0
    %83 = vmatpush1.bf16.msra.mxu0 0
    %84 = vmatprep.subr.bf16.mxu0 0
    %85 = vmatpush1.bf16.msra.mxu0 0
    %86 = vmatprep.subr.bf16.mxu0 0
    %87 = vmatpush1.bf16.msra.mxu0 0
    %88 = vmatprep.subr.bf16.mxu0 0
    %89 = vmatpush1.bf16.msra.mxu0 0
    %90 = vmatprep.subr.bf16.mxu0 0
    %91 = vmatpush1.bf16.msra.mxu0 0
    %92 = vmatprep.subr.bf16.mxu0 0
    %93 = vmatpush1.bf16.msra.mxu0 0
    %94 = vmatprep.subr.bf16.mxu0 0
    %95 = vmatpush1.bf16.msra.mxu0 0
    %96 = vmatprep.mubr.bf16.mxu0 0
    %97 = vmatmul.mubr.bf16.gmra.mrb[0].mxu0 %v62
    %v98 = vpop.f32.mrb[0].mxu0
    %v99 = vadd.f32 %v46, %v98
    %v100 = vpop.f32.mrb[0].mxu0
    %v101 = vpop.f32.mrb[0].mxu0
    %v102 = vpop.f32.mrb[0].mxu0
    %103 = vdwg.mxu0
    %v104 = vtanh.pop %v99
    %v105 = vpack.c.bf16 %v104, %v104
    %v106 = vld [vmem:[%s3] sm:$0xf]
    %v107 = vld [vmem:[%s3 + $0x4] sm:$0xf]
    %v108 = vld [vmem:[%s3 + $0x8] sm:$0xf]
    %v109 = vld [vmem:[%s3 + $0xc] sm:$0xf]
    %v110 = vld [vmem:[%s4] sm:$0x1]
    %v112 = vlaneseq
    %v113 = vshrl.u32 %v112, 7
    %v114 = vsub.s32 0, %v113
    %v115 = vrot.slane %v110, %v114
    %v121 = vunpack.c.l.b16 %v106
    %v122 = vunpack.c.l.b16 %v107
    %v123 = vunpack.c.l.b16 %v108
    %v124 = vunpack.c.l.b16 %v109
    %v125 = vpack.c.b16 %v122, %v121
    %v126 = vpack.c.b16 %v124, %v123
    %v130 = vsel %vm60, %v105, 0
    %132 = vmatprep.subr.bf16.mxu0 0
    %133 = vmatpush1.bf16.msra.mxu0 %v125
    %134 = vmatprep.subr.bf16.mxu0 0
    %135 = vmatpush1.bf16.msra.mxu0 %v126
    %136 = vmatprep.subr.bf16.mxu0 0
    %137 = vmatpush1.bf16.msra.mxu0 0
    %138 = vmatprep.subr.bf16.mxu0 0
    %139 = vmatpush1.bf16.msra.mxu0 0
    %140 = vmatprep.subr.bf16.mxu0 0
    %141 = vmatpush1.bf16.msra.mxu0 0
    %142 = vmatprep.subr.bf16.mxu0 0
    %143 = vmatpush1.bf16.msra.mxu0 0
    %144 = vmatprep.subr.bf16.mxu0 0
    %145 = vmatpush1.bf16.msra.mxu0 0
    %146 = vmatprep.subr.bf16.mxu0 0
    %147 = vmatpush1.bf16.msra.mxu0 0
    %148 = vmatprep.subr.bf16.mxu0 0
    %149 = vmatpush1.bf16.msra.mxu0 0
    %150 = vmatprep.subr.bf16.mxu0 0
    %151 = vmatpush1.bf16.msra.mxu0 0
    %152 = vmatprep.subr.bf16.mxu0 0
    %153 = vmatpush1.bf16.msra.mxu0 0
    %154 = vmatprep.subr.bf16.mxu0 0
    %155 = vmatpush1.bf16.msra.mxu0 0
    %156 = vmatprep.subr.bf16.mxu0 0
    %157 = vmatpush1.bf16.msra.mxu0 0
    %158 = vmatprep.subr.bf16.mxu0 0
    %159 = vmatpush1.bf16.msra.mxu0 0
    %160 = vmatprep.subr.bf16.mxu0 0
    %161 = vmatpush1.bf16.msra.mxu0 0
    %162 = vmatprep.subr.bf16.mxu0 0
    %163 = vmatpush1.bf16.msra.mxu0 0
    %164 = vmatprep.mubr.bf16.mxu0 0
    %165 = vmatmul.mubr.bf16.gmra.mrb[0].mxu0 %v130
    %v166 = vpop.f32.mrb[0].mxu0
    %v167 = vadd.f32 %v115, %v166
    %v168 = vpop.f32.mrb[0].mxu0
    %v169 = vpop.f32.mrb[0].mxu0
    %v170 = vpop.f32.mrb[0].mxu0
    %171 = vdwg.mxu0
    %172 = vst [vmem:[%s5] sm:$0xff] %v167
    // Predicated region
    $region26: #{classification_head_prepared.1} parent=1 // pred_check
      _
    $region27: #{classification_head_prepared.1} parent=1 // pred_check_branch
      %174 = sbr.rel (0) target = $region29
    $region28: #{classification_head_prepared.1} parent=1 // pred_region
      _
    $region29: #{classification_head_prepared.1} parent=1 // pred_fallthru
      _
    // Predicated region
    $region30: #{classification_head_prepared.1} parent=1 // pred_check
      _
    $region31: #{classification_head_prepared.1} parent=1 // pred_check_branch
      %176 = sbr.rel (0) target = $region33
    $region32: #{classification_head_prepared.1} parent=1 // pred_region
      _
    $region33: #{classification_head_prepared.1} parent=1 // pred_fallthru
      _
    %177 = vsyncpa [#allocation3], 1

</llo_original>
